<compile_context>
chip_gen: v7x
topology: tpu7x:2x2x1
jax: 0.10.0
libtpu: 0.0.40
codegen_flags: <defaults>
</compile_context>

<pallas_src>
import jax
import jax.numpy as jnp
from jax.experimental import pallas as pl
from jax.experimental.pallas import tpu as pltpu

_LANE = 128
_SUBLANE = 8


def _cdiv(a, b):
    return -(-a // b)


def _round_up(a, b):
    return _cdiv(a, b) * b


def mlp_actor_kernel(x_ref, w1_ref, b1_ref, w2_ref, b2_ref, w3_ref, b3_ref, o_ref):
    # In-kernel bf16 cast of x (cheap VPU op hidden under the MXU) -> native MXU path.
    x = x_ref[...].astype(jnp.bfloat16)
    # Layer 1: Linear (bf16 x bf16 -> f32 acc) + Tanh in f32.
    h = jnp.dot(x, w1_ref[...], preferred_element_type=jnp.float32)
    h = jnp.tanh(h + b1_ref[...])
    # Layer 2: Linear + Tanh (cast activation back to bf16 for the MXU).
    h = jnp.dot(h.astype(jnp.bfloat16), w2_ref[...], preferred_element_type=jnp.float32)
    h = jnp.tanh(h + b2_ref[...])
    # Output layer: Linear + Identity.
    o = jnp.dot(h.astype(jnp.bfloat16), w3_ref[...], preferred_element_type=jnp.float32)
    o_ref[...] = (o + b3_ref[...]).astype(o_ref.dtype)


def prepare_params(params):
    """One-time cast of the f32 master params to the kernel's compute dtypes.

    Call once outside the hot loop; the forward wrapper then launches no extra
    cast ops per step (astype on an already-cast array is a no-op)."""
    return {
        "w1": params["w1"].astype(jnp.bfloat16),
        "w2": params["w2"].astype(jnp.bfloat16),
        "w3": params["w3"].astype(jnp.bfloat16),
        "b1": params["b1"].astype(jnp.float32),
        "b2": params["b2"].astype(jnp.float32),
        "b3": params["b3"].astype(jnp.float32),
    }


def _choose_block_batch(batch, block_batch):
    """Batch tile: multiple of 8 (sublane), capped for VMEM, and an even number
    of tiles when tiling (v7x: 2 TensorCores share the parallel grid axis)."""
    tb = max(_SUBLANE, min(block_batch, 8192))
    tb = (tb // _SUBLANE) * _SUBLANE
    num_tiles = _cdiv(batch, tb)
    if num_tiles > 1 and num_tiles % 2 == 1:
        tb2 = _round_up(_cdiv(batch, num_tiles + 1), _SUBLANE)
        if tb2 >= _SUBLANE and _cdiv(batch, tb2) % 2 == 0:
            tb = tb2
    return tb


def mlp_gaussian_actor_forward(x, params, *, block_batch=4096):
    """Fused forward pass of the actor MLP on TPU via Pallas.

    x: [batch, obs_dim] float32
    params: dict from prepare_params() (bf16 weights, f32 biases).  Raw f32
            params are also accepted; the casts below are then ordinary XLA ops.
    returns mu: [batch, action_dim] float32
    """
    w1 = params["w1"].astype(jnp.bfloat16)
    w2 = params["w2"].astype(jnp.bfloat16)
    w3 = params["w3"].astype(jnp.bfloat16)
    b1 = params["b1"].astype(jnp.float32)
    b2 = params["b2"].astype(jnp.float32)
    b3 = params["b3"].astype(jnp.float32)
    x = x.astype(jnp.float32)  # no-op for f32 inputs; bf16 cast happens in-kernel

    batch, obs_dim = x.shape
    h1, h2 = w1.shape[1], w2.shape[1]
    action_dim = w3.shape[1]

    weight_bytes = sum(int(a.size) * a.dtype.itemsize
                       for a in (w1, b1, w2, b2, w3, b3))
    cost = pl.CostEstimate(
        flops=2 * batch * (obs_dim * h1 + h1 * h2 + h2 * action_dim),
        transcendentals=batch * (h1 + h2),
        bytes_accessed=batch * obs_dim * 4 + batch * action_dim * 4 + weight_bytes,
    )

    # Full-array block (block_shape == array shape satisfies the (8,128) rule).
    # index_map works for both grid=() and grid=(n,) thanks to *_.
    full = lambda a: pl.BlockSpec(a.shape, lambda *_: (0,) * a.ndim)

    if batch <= block_batch:
        # Small-batch / latency regime: one full-array block, no grid, no
        # per-step overhead, no tail handling needed.
        return pl.pallas_call(
            mlp_actor_kernel,
            out_shape=jax.ShapeDtypeStruct((batch, action_dim), jnp.float32),
            grid_spec=pl.GridSpec(
                grid=(),
                in_specs=[full(x), full(w1), full(b1), full(w2), full(b2),
                          full(w3), full(b3)],
                out_specs=pl.BlockSpec((batch, action_dim), lambda: (0, 0)),
            ),
            cost_estimate=cost,
        )(x, w1, b1, w2, b2, w3, b3)

    # Large-batch regime: tile the batch axis, keep weights resident in VMEM
    # (constant index_maps); the tail tile is ragged and handled by Pallas
    # (padded read, masked store) -- no wrapper-side pad/slice copies.
    tb = _choose_block_batch(batch, block_batch)
    num_tiles = _cdiv(batch, tb)

    # Lane-padded, double-buffered VMEM budget for the streamed tiles
    # (x f32 + out f32, both padded to 128 lanes) plus the resident weights.
    pad = lambda n: _round_up(n, _LANE)
    stream_bytes = 2 * (tb * pad(obs_dim) * 4 + tb * pad(action_dim) * 4)
    wpad_bytes = (_round_up(obs_dim, _SUBLANE) * pad(h1) * 2
                  + _round_up(h1, _SUBLANE) * pad(h2) * 2
                  + _round_up(h2, _SUBLANE) * pad(action_dim) * 2
                  + _SUBLANE * (pad(h1) + pad(h2) + pad(action_dim)) * 4)
    vmem_limit = int(min(56 * 1024 * 1024,
                         max(32 * 1024 * 1024,
                             stream_bytes + 2 * wpad_bytes + (4 << 20))))

    return pl.pallas_call(
        mlp_actor_kernel,
        out_shape=jax.ShapeDtypeStruct((batch, action_dim), jnp.float32),
        grid_spec=pltpu.PrefetchScalarGridSpec(
            num_scalar_prefetch=0,
            grid=(num_tiles,),
            in_specs=[
                pl.BlockSpec((tb, obs_dim), lambda i: (i, 0)),
                full(w1), full(b1), full(w2), full(b2), full(w3), full(b3),
            ],
            out_specs=pl.BlockSpec((tb, action_dim), lambda i: (i, 0)),
        ),
        compiler_params=pltpu.CompilerParams(
            dimension_semantics=("parallel",),  # v7x: shard batch tiles across TCs
            vmem_limit_bytes=vmem_limit,
        ),
        cost_estimate=cost,
    )(x, w1, b1, w2, b2, w3, b3)


def init_params(key, obs_dim, hidden_sizes, action_dim):
    """Deterministic init mimicking PyTorch nn.Linear defaults:
    U(-1/sqrt(fan_in), 1/sqrt(fan_in)) for weights and biases."""
    sizes = [obs_dim] + list(hidden_sizes) + [action_dim]
    params = {}
    for i in range(len(sizes) - 1):
        fan_in, fan_out = sizes[i], sizes[i + 1]
        bound = 1.0 / jnp.sqrt(jnp.float32(fan_in))
        key, kw, kb = jax.random.split(key, 3)
        # stored as [in, out] (transposed vs PyTorch's [out, in])
        params[f"w{i+1}"] = jax.random.uniform(
            kw, (fan_in, fan_out), jnp.float32, -bound, bound)
        params[f"b{i+1}"] = jax.random.uniform(
            kb, (1, fan_out), jnp.float32, -bound, bound)
    # log_std parameter (unused by forward(), part of the module's state)
    params["log_std"] = -0.5 * jnp.ones((action_dim,), jnp.float32)
    return params


def reference_forward_bf16(x, params):
    """Pure-JAX reference with the same bf16-matmul / f32-accum numerics."""
    w1 = params["w1"].astype(jnp.bfloat16)
    w2 = params["w2"].astype(jnp.bfloat16)
    w3 = params["w3"].astype(jnp.bfloat16)
    h = jnp.dot(x.astype(jnp.bfloat16), w1, preferred_element_type=jnp.float32)
    h = jnp.tanh(h + params["b1"])
    h = jnp.dot(h.astype(jnp.bfloat16), w2, preferred_element_type=jnp.float32)
    h = jnp.tanh(h + params["b2"])
    o = jnp.dot(h.astype(jnp.bfloat16), w3, preferred_element_type=jnp.float32)
    return o + params["b3"]


def reference_forward_f32(x, params):
    """Pure f32 math of the original PyTorch module (loose comparison only)."""
    h = jnp.tanh(x @ params["w1"] + params["b1"])
    h = jnp.tanh(h @ params["w2"] + params["b2"])
    return h @ params["w3"] + params["b3"]


if __name__ == "__main__":
    obs_dim = 16
    hidden_sizes = (32, 32)
    action_dim = 8

    key = jax.random.PRNGKey(0)
    key, kx1, kx2, kx3 = jax.random.split(key, 4)
    params = init_params(key, obs_dim, hidden_sizes, action_dim)
    prepared = prepare_params(params)  # one-time bf16/f32 casts, off the hot path

    # 1) Small-batch path (grid=() single block).
    x_small = jax.random.normal(kx1, (8, obs_dim), jnp.float32)
    mu_small = jax.block_until_ready(mlp_gaussian_actor_forward(x_small, prepared))
    ref_small = reference_forward_bf16(x_small, params)
    assert mu_small.shape == (8, action_dim)
    assert jnp.allclose(mu_small, ref_small, atol=1e-4, rtol=1e-4), \
        "small-batch mismatch vs bf16 reference"

    # 2) Tiled path, batch divides evenly into 2 tiles (v7x: one per TC).
    x_even = jax.random.normal(kx2, (512, obs_dim), jnp.float32)
    mu_even = jax.block_until_ready(
        mlp_gaussian_actor_forward(x_even, prepared, block_batch=256))
    ref_even = reference_forward_bf16(x_even, params)
    assert mu_even.shape == (512, action_dim)
    assert jnp.allclose(mu_even, ref_even, atol=1e-4, rtol=1e-4), \
        "even-tiled mismatch vs bf16 reference"

    # 3) Tiled path with a ragged batch: exercises the even-tile-count pick
    #    (520 -> 4 tiles of 136) and Pallas' masked tail-block store, with no
    #    wrapper-side pad/slice copies.
    x_big = jax.random.normal(kx3, (520, obs_dim), jnp.float32)
    mu_big = jax.block_until_ready(
        mlp_gaussian_actor_forward(x_big, prepared, block_batch=256))
    ref_big = reference_forward_bf16(x_big, params)
    assert mu_big.shape == (520, action_dim)
    assert jnp.allclose(mu_big, ref_big, atol=1e-4, rtol=1e-4), \
        "ragged-tiled mismatch vs bf16 reference"

    # Loose sanity check against the original module's pure-f32 math
    # (bf16 inputs introduce ~0.4% rounding, well inside this tolerance).
    ref_f32 = reference_forward_f32(x_big, params)
    assert jnp.allclose(mu_big, ref_f32, atol=1e-1, rtol=1e-1), \
        "ragged-tiled far from f32 reference"

    print("KERNEL_OK")
</pallas_src>

<mosaic_0001>
module attributes {stable_mosaic.version = 11 : i64} {
  func.func @mlp_actor_kernel(%arg0: memref<8x16xf32, #tpu.memory_space<vmem>>, %arg1: memref<16x32xbf16, #tpu.memory_space<vmem>>, %arg2: memref<1x32xf32, #tpu.memory_space<vmem>>, %arg3: memref<32x32xbf16, #tpu.memory_space<vmem>>, %arg4: memref<1x32xf32, #tpu.memory_space<vmem>>, %arg5: memref<32x8xbf16, #tpu.memory_space<vmem>>, %arg6: memref<1x8xf32, #tpu.memory_space<vmem>>, %arg7: memref<8x8xf32, #tpu.memory_space<vmem>>) attributes {dimension_semantics = [], scalar_prefetch = 0 : i64, scratch_operands = 0 : i64, tpu.core_type = #tpu.core_type<tc>} {
    %c0 = arith.constant 0 : index
    %c0_0 = arith.constant 0 : index
    %0 = vector.load %arg0[%c0, %c0_0] : memref<8x16xf32, #tpu.memory_space<vmem>>, vector<8x16xf32>
    %1 = arith.truncf %0 : vector<8x16xf32> to vector<8x16xbf16>
    %c0_1 = arith.constant 0 : index
    %c0_2 = arith.constant 0 : index
    %2 = vector.load %arg1[%c0_1, %c0_2] : memref<16x32xbf16, #tpu.memory_space<vmem>>, vector<16x32xbf16>
    %cst = arith.constant dense<0.000000e+00> : vector<8x32xf32>
    %3 = tpu.matmul %1, %2, %cst {dimension_numbers = #tpu.dot_dimension_numbers<[1], [0], [0], [1], [0, 0, 1, 1], [], []>} : vector<8x16xbf16>, vector<16x32xbf16>, vector<8x32xf32> -> vector<8x32xf32>
    %c0_3 = arith.constant 0 : index
    %c0_4 = arith.constant 0 : index
    %4 = vector.load %arg2[%c0_3, %c0_4] : memref<1x32xf32, #tpu.memory_space<vmem>>, vector<1x32xf32>
    %5 = vector.broadcast %4 : vector<1x32xf32> to vector<8x32xf32>
    %6 = arith.addf %3, %5 : vector<8x32xf32>
    %7 = math.tanh %6 : vector<8x32xf32>
    %8 = arith.truncf %7 : vector<8x32xf32> to vector<8x32xbf16>
    %c0_5 = arith.constant 0 : index
    %c0_6 = arith.constant 0 : index
    %9 = vector.load %arg3[%c0_5, %c0_6] : memref<32x32xbf16, #tpu.memory_space<vmem>>, vector<32x32xbf16>
    %cst_7 = arith.constant dense<0.000000e+00> : vector<8x32xf32>
    %10 = tpu.matmul %8, %9, %cst_7 {dimension_numbers = #tpu.dot_dimension_numbers<[1], [0], [0], [1], [0, 0, 1, 1], [], []>} : vector<8x32xbf16>, vector<32x32xbf16>, vector<8x32xf32> -> vector<8x32xf32>
    %c0_8 = arith.constant 0 : index
    %c0_9 = arith.constant 0 : index
    %11 = vector.load %arg4[%c0_8, %c0_9] : memref<1x32xf32, #tpu.memory_space<vmem>>, vector<1x32xf32>
    %12 = vector.broadcast %11 : vector<1x32xf32> to vector<8x32xf32>
    %13 = arith.addf %10, %12 : vector<8x32xf32>
    %14 = math.tanh %13 : vector<8x32xf32>
    %15 = arith.truncf %14 : vector<8x32xf32> to vector<8x32xbf16>
    %c0_10 = arith.constant 0 : index
    %c0_11 = arith.constant 0 : index
    %16 = vector.load %arg5[%c0_10, %c0_11] : memref<32x8xbf16, #tpu.memory_space<vmem>>, vector<32x8xbf16>
    %cst_12 = arith.constant dense<0.000000e+00> : vector<8x8xf32>
    %17 = tpu.matmul %15, %16, %cst_12 {dimension_numbers = #tpu.dot_dimension_numbers<[1], [0], [0], [1], [0, 0, 1, 1], [], []>} : vector<8x32xbf16>, vector<32x8xbf16>, vector<8x8xf32> -> vector<8x8xf32>
    %c0_13 = arith.constant 0 : index
    %c0_14 = arith.constant 0 : index
    %18 = vector.load %arg6[%c0_13, %c0_14] : memref<1x8xf32, #tpu.memory_space<vmem>>, vector<1x8xf32>
    %19 = vector.broadcast %18 : vector<1x8xf32> to vector<8x8xf32>
    %20 = arith.addf %17, %19 : vector<8x8xf32>
    %c0_15 = arith.constant 0 : index
    %c0_16 = arith.constant 0 : index
    %21 = vector.load %arg7[%c0_15, %c0_16] : memref<8x8xf32, #tpu.memory_space<vmem>>, vector<8x8xf32>
    tpu.vector_store %arg7[%c0_15, %c0_16], %20 {strides = array<i32>} : memref<8x8xf32, #tpu.memory_space<vmem>>, vector<8x8xf32>,
    return
  }
}

</mosaic_0001>

<llo_original>
// kernel: tpu_custom_call.1
$region0: #{tpu_custom_call.1}
  #allocation0 [shape = 'u32[]', space=smem, size = 0x4, offset = 0x4, fixed_abs, tag = 'smem constant byte address 0x4 - core index']
  #allocation1 [shape = 'u32[144,128]{1,0:T(1,128)}', space=vmem, size = 0x12000, scoped, tag = 'internal scratch']
  %s0 = inlined_call_operand.vmem [shape: f32[8,16], index: 0, kind: input, shape index: {}]
  %s1 = inlined_call_operand.hbm [shape: bf16[16,32], index: 1, kind: input, shape index: {}]
  %s2 = inlined_call_operand.vmem [shape: f32[1,32], index: 2, kind: input, shape index: {}]
  %s3 = inlined_call_operand.vmem [shape: bf16[32,32], index: 3, kind: input, shape index: {}]
  %s4 = inlined_call_operand.vmem [shape: f32[1,32], index: 4, kind: input, shape index: {}]
  %s5 = inlined_call_operand.vmem [shape: bf16[32,8], index: 5, kind: input, shape index: {}]
  %s6 = inlined_call_operand.vmem [shape: f32[1,8], index: 6, kind: input, shape index: {}]
  %s7 = inlined_call_operand.hbm [shape: f32[8,8], index: 7, kind: output, shape index: {}]
  %s8 = sld [smem:[#allocation0]]
  $region42: #{tpu_custom_call.1} parent=0
    _
  %s10 = ssub.s32 1, %s8
  %s11 = scalar_select 0, %s10, %s8
  $region1: #{tpu_custom_call.1} parent=0
    #allocation2 [shape = 'u8[4096]{0}', space=vmem, size = 0x1000, scoped, tag = 'input window, operand 1, single buffered']
    #allocation3 [shape = 's32[1]{0}', space=sflag, size = 0x4, scoped, tag = 'scoped memory for tpu_custom_call.1']
    #allocation4 [shape = 's32[1]{0}', space=sflag, size = 0x4, scoped, tag = 'scoped memory for tpu_custom_call.1']
    #allocation5 [shape = 'u8[4096]{0}', space=vmem, size = 0x1000, scoped, tag = 'output window, operand 0, single buffered']
    %12 = vsyncpa [#allocation3], 0
    %13 = vsyncpa [#allocation4], 0
    // Predicated region
    $region2: #{tpu_custom_call.1} parent=1 // pred_check
      _
    $region3: #{tpu_custom_call.1} parent=1 // pred_check_branch
      %15 = sbr.rel (0) target = $region5
    $region4: #{tpu_custom_call.1} parent=1 // pred_region
      _
    $region5: #{tpu_custom_call.1} parent=1 // pred_fallthru
      _
    // Predicated region
    $region6: #{tpu_custom_call.1} parent=1 // pred_check
      _
    $region7: #{tpu_custom_call.1} parent=1 // pred_check_branch
      %17 = sbr.rel (0) target = $region9
    $region8: #{tpu_custom_call.1} parent=1 // pred_region
      %s19 = ssub.s32 128, 128
      %20 = vsyncadd [#allocation3], %s19
      %s21 = sshll.u32 [#allocation2], 4
      %s22 = int_to_ptr.vmem [resolvable:$true] %s21
      %27 = dma.hbm_to_vmem [thread:$0]  %s1, 128, %s22, [#allocation3], 64, 64, 4
    $region9: #{tpu_custom_call.1} parent=1 // pred_fallthru
      _
    // Predicated region
    $region10: #{tpu_custom_call.1} parent=1 // pred_check
      _
    $region11: #{tpu_custom_call.1} parent=1 // pred_check_branch
      %29 = sbr.rel (0) target = $region13
    $region12: #{tpu_custom_call.1} parent=1 // pred_region
      _
    $region13: #{tpu_custom_call.1} parent=1 // pred_fallthru
      _
    // Predicated region
    $region14: #{tpu_custom_call.1} parent=1 // pred_check
      _
    $region15: #{tpu_custom_call.1} parent=1 // pred_check_branch
      %31 = sbr.rel (0) target = $region17
    $region16: #{tpu_custom_call.1} parent=1 // pred_region
      _
    $region17: #{tpu_custom_call.1} parent=1 // pred_fallthru
      _
    // Predicated region
    $region18: #{tpu_custom_call.1} parent=1 // pred_check
      _
    $region19: #{tpu_custom_call.1} parent=1 // pred_check_branch
      %33 = sbr.rel (0) target = $region21
    $region20: #{tpu_custom_call.1} parent=1 // pred_region
      _
    $region21: #{tpu_custom_call.1} parent=1 // pred_fallthru
      _
    // Predicated region
    $region22: #{tpu_custom_call.1} parent=1 // pred_check
      _
    $region23: #{tpu_custom_call.1} parent=1 // pred_check_branch
      %35 = sbr.rel (0) target = $region25
    $region24: #{tpu_custom_call.1} parent=1 // pred_region
      _
    $region25: #{tpu_custom_call.1} parent=1 // pred_fallthru
      _
    // Predicated region
    $region26: #{tpu_custom_call.1} parent=1 // pred_check
      _
    $region27: #{tpu_custom_call.1} parent=1 // pred_check_branch
      %37 = sbr.rel (0) target = $region29
    $region28: #{tpu_custom_call.1} parent=1 // pred_region
      _
    $region29: #{tpu_custom_call.1} parent=1 // pred_fallthru
      _
    // Predicated region
    $region30: #{tpu_custom_call.1} parent=1 // pred_check
      _
    $region31: #{tpu_custom_call.1} parent=1 // pred_check_branch
      %39 = sbr.rel (0) target = $region33
    $region32: #{tpu_custom_call.1} parent=1 // pred_region
      %40 = dma.done [#allocation3], 128
    $region33: #{tpu_custom_call.1} parent=1 // pred_fallthru
      _
    %v42 = vld [vmem:[%s0] sm:$0xff]
    %v43 = vpack.c.bf16 %v42, %v42
    %v44 = vld [vmem:[#allocation2] sm:$0xf]
    %v45 = vld [vmem:[#allocation2 + $0x4] sm:$0xf]
    %v46 = vld [vmem:[%s2] sm:$0x1]
    %v48 = vlaneseq
    %v49 = vshrl.u32 %v48, 7
    %v50 = vsub.s32 0, %v49
    %v51 = vrot.slane %v46, %v50
    %v55 = vunpack.c.l.b16 %v44
    %v56 = vunpack.c.l.b16 %v45
    %v57 = vpack.c.b16 %v56, %v55
    %vm59 = vcmask 130048
    %v61 = vsel %vm59, %v43, 0
    %63 = vmatprep.subr.bf16.mxu0 0
    %64 = vmatpush1.bf16.msra.mxu0 %v57
    %65 = vmatprep.subr.bf16.mxu0 0
    %66 = vmatpush1.bf16.msra.mxu0 0
    %67 = vmatprep.subr.bf16.mxu0 0
    %68 = vmatpush1.bf16.msra.mxu0 0
    %69 = vmatprep.subr.bf16.mxu0 0
    %70 = vmatpush1.bf16.msra.mxu0 0
    %71 = vmatprep.subr.bf16.mxu0 0
    %72 = vmatpush1.bf16.msra.mxu0 0
    %73 = vmatprep.subr.bf16.mxu0 0
    %74 = vmatpush1.bf16.msra.mxu0 0
    %75 = vmatprep.subr.bf16.mxu0 0
    %76 = vmatpush1.bf16.msra.mxu0 0
    %77 = vmatprep.subr.bf16.mxu0 0
    %78 = vmatpush1.bf16.msra.mxu0 0
    %79 = vmatprep.subr.bf16.mxu0 0
    %80 = vmatpush1.bf16.msra.mxu0 0
    %81 = vmatprep.subr.bf16.mxu0 0
    %82 = vmatpush1.bf16.msra.mxu0 0
    %83 = vmatprep.subr.bf16.mxu0 0
    %84 = vmatpush1.bf16.msra.mxu0 0
    %85 = vmatprep.subr.bf16.mxu0 0
    %86 = vmatpush1.bf16.msra.mxu0 0
    %87 = vmatprep.subr.bf16.mxu0 0
    %88 = vmatpush1.bf16.msra.mxu0 0
    %89 = vmatprep.subr.bf16.mxu0 0
    %90 = vmatpush1.bf16.msra.mxu0 0
    %91 = vmatprep.subr.bf16.mxu0 0
    %92 = vmatpush1.bf16.msra.mxu0 0
    %93 = vmatprep.subr.bf16.mxu0 0
    %94 = vmatpush1.bf16.msra.mxu0 0
    %95 = vmatprep.mubr.bf16.mxu0 0
    %96 = vmatmul.mubr.bf16.gmra.mrb[0].mxu0 %v61
    %v97 = vpop.f32.mrb[0].mxu0
    %v98 = vadd.f32 %v51, %v97
    %v99 = vpop.f32.mrb[0].mxu0
    %v100 = vpop.f32.mrb[0].mxu0
    %v101 = vpop.f32.mrb[0].mxu0
    %102 = vdwg.mxu0
    %v103 = vtanh.pop %v98
    %v104 = vpack.c.bf16 %v103, %v103
    %v105 = vld [vmem:[%s3] sm:$0xf]
    %v106 = vld [vmem:[%s3 + $0x4] sm:$0xf]
    %v107 = vld [vmem:[%s3 + $0x8] sm:$0xf]
    %v108 = vld [vmem:[%s3 + $0xc] sm:$0xf]
    %v109 = vld [vmem:[%s4] sm:$0x1]
    %v111 = vlaneseq
    %v112 = vshrl.u32 %v111, 7
    %v113 = vsub.s32 0, %v112
    %v114 = vrot.slane %v109, %v113
    %v120 = vunpack.c.l.b16 %v105
    %v121 = vunpack.c.l.b16 %v106
    %v122 = vunpack.c.l.b16 %v107
    %v123 = vunpack.c.l.b16 %v108
    %v124 = vpack.c.b16 %v121, %v120
    %v125 = vpack.c.b16 %v123, %v122
    %vm128 = vcmask 261120
    %v130 = vsel %vm128, %v104, 0
    %132 = vmatprep.subr.bf16.mxu0 0
    %133 = vmatpush1.bf16.msra.mxu0 %v124
    %134 = vmatprep.subr.bf16.mxu0 0
    %135 = vmatpush1.bf16.msra.mxu0 %v125
    %136 = vmatprep.subr.bf16.mxu0 0
    %137 = vmatpush1.bf16.msra.mxu0 0
    %138 = vmatprep.subr.bf16.mxu0 0
    %139 = vmatpush1.bf16.msra.mxu0 0
    %140 = vmatprep.subr.bf16.mxu0 0
    %141 = vmatpush1.bf16.msra.mxu0 0
    %142 = vmatprep.subr.bf16.mxu0 0
    %143 = vmatpush1.bf16.msra.mxu0 0
    %144 = vmatprep.subr.bf16.mxu0 0
    %145 = vmatpush1.bf16.msra.mxu0 0
    %146 = vmatprep.subr.bf16.mxu0 0
    %147 = vmatpush1.bf16.msra.mxu0 0
    %148 = vmatprep.subr.bf16.mxu0 0
    %149 = vmatpush1.bf16.msra.mxu0 0
    %150 = vmatprep.subr.bf16.mxu0 0
    %151 = vmatpush1.bf16.msra.mxu0 0
    %152 = vmatprep.subr.bf16.mxu0 0
    %153 = vmatpush1.bf16.msra.mxu0 0
    %154 = vmatprep.subr.bf16.mxu0 0
    %155 = vmatpush1.bf16.msra.mxu0 0
    %156 = vmatprep.subr.bf16.mxu0 0
    %157 = vmatpush1.bf16.msra.mxu0 0
    %158 = vmatprep.subr.bf16.mxu0 0
    %159 = vmatpush1.bf16.msra.mxu0 0
    %160 = vmatprep.subr.bf16.mxu0 0
    %161 = vmatpush1.bf16.msra.mxu0 0
    %162 = vmatprep.subr.bf16.mxu0 0
    %163 = vmatpush1.bf16.msra.mxu0 0
    %164 = vmatprep.mubr.bf16.mxu0 0
    %165 = vmatmul.mubr.bf16.gmra.mrb[0].mxu0 %v130
    %v166 = vpop.f32.mrb[0].mxu0
    %v167 = vadd.f32 %v114, %v166
    %v168 = vpop.f32.mrb[0].mxu0
    %v169 = vpop.f32.mrb[0].mxu0
    %v170 = vpop.f32.mrb[0].mxu0
    %171 = vdwg.mxu0
    %v172 = vtanh.pop %v167
    %v173 = vpack.c.bf16 %v172, %v172
    %v174 = vld [vmem:[%s5] sm:$0xf]
    %v175 = vld [vmem:[%s5 + $0x4] sm:$0xf]
    %v176 = vld [vmem:[%s5 + $0x8] sm:$0xf]
    %v177 = vld [vmem:[%s5 + $0xc] sm:$0xf]
    %v178 = vld [vmem:[%s6] sm:$0x1]
    %v180 = vlaneseq
    %v181 = vshrl.u32 %v180, 7
    %v182 = vsub.s32 0, %v181
    %v183 = vrot.slane %v178, %v182
    %v189 = vunpack.c.l.b16 %v174
    %v190 = vunpack.c.l.b16 %v175
    %v191 = vunpack.c.l.b16 %v176
    %v192 = vunpack.c.l.b16 %v177
    %v193 = vpack.c.b16 %v190, %v189
    %v194 = vpack.c.b16 %v192, %v191
    %v198 = vsel %vm128, %v173, 0
    %200 = vmatprep.subr.bf16.mxu0 0
    %201 = vmatpush1.bf16.msra.mxu0 %v193
    %202 = vmatprep.subr.bf16.mxu0 0
    %203 = vmatpush1.bf16.msra.mxu0 %v194
    %204 = vmatprep.subr.bf16.mxu0 0
    %205 = vmatpush1.bf16.msra.mxu0 0
    %206 = vmatprep.subr.bf16.mxu0 0
    %207 = vmatpush1.bf16.msra.mxu0 0
    %208 = vmatprep.subr.bf16.mxu0 0
    %209 = vmatpush1.bf16.msra.mxu0 0
    %210 = vmatprep.subr.bf16.mxu0 0
    %211 = vmatpush1.bf16.msra.mxu0 0
    %212 = vmatprep.subr.bf16.mxu0 0
    %213 = vmatpush1.bf16.msra.mxu0 0
    %214 = vmatprep.subr.bf16.mxu0 0
    %215 = vmatpush1.bf16.msra.mxu0 0
    %216 = vmatprep.subr.bf16.mxu0 0
    %217 = vmatpush1.bf16.msra.mxu0 0
    %218 = vmatprep.subr.bf16.mxu0 0
    %219 = vmatpush1.bf16.msra.mxu0 0
    %220 = vmatprep.subr.bf16.mxu0 0
    %221 = vmatpush1.bf16.msra.mxu0 0
    %222 = vmatprep.subr.bf16.mxu0 0
    %223 = vmatpush1.bf16.msra.mxu0 0
    %224 = vmatprep.subr.bf16.mxu0 0
    %225 = vmatpush1.bf16.msra.mxu0 0
    %226 = vmatprep.subr.bf16.mxu0 0
    %227 = vmatpush1.bf16.msra.mxu0 0
    %228 = vmatprep.subr.bf16.mxu0 0
    %229 = vmatpush1.bf16.msra.mxu0 0
    %230 = vmatprep.subr.bf16.mxu0 0
    %231 = vmatpush1.bf16.msra.mxu0 0
    %232 = vmatprep.mubr.bf16.mxu0 0
    %233 = vmatmul.mubr.bf16.gmra.mrb[0].mxu0 %v198
    %v234 = vpop.f32.mrb[0].mxu0
    %v235 = vadd.f32 %v183, %v234
    %v236 = vpop.f32.mrb[0].mxu0
    %v237 = vpop.f32.mrb[0].mxu0
    %v238 = vpop.f32.mrb[0].mxu0
    %239 = vdwg.mxu0
    %vm240 = vcmask 64512
    %241 = vst.msk [vmem:[#allocation5] sm:$0xff] %vm240, %v235
    // Predicated region
    $region34: #{tpu_custom_call.1} parent=1 // pred_check
      _
    $region35: #{tpu_custom_call.1} parent=1 // pred_check_branch
      %243 = sbr.rel (0) target = $region37
    $region36: #{tpu_custom_call.1} parent=1 // pred_region
      %s245 = ssub.s32 128, 128
      %246 = vsyncadd [#allocation4], %s245
      %s248 = sshll.u32 [#allocation5], 4
      %s249 = int_to_ptr.vmem [resolvable:$true] %s248
      %251 = dma.vmem_to_hbm [thread:$0]  %s249, 128, %s7, [#allocation4]
    $region37: #{tpu_custom_call.1} parent=1 // pred_fallthru
      _
    // Predicated region
    $region38: #{tpu_custom_call.1} parent=1 // pred_check
      _
    $region39: #{tpu_custom_call.1} parent=1 // pred_check_branch
      %253 = sbr.rel (0) target = $region41
    $region40: #{tpu_custom_call.1} parent=1 // pred_region
      %254 = dma.done [#allocation4], 128
    $region41: #{tpu_custom_call.1} parent=1 // pred_fallthru
      _
    %255 = vsyncpa [#allocation3], 1
    %256 = vsyncpa [#allocation4], 1

</llo_original>
